<compile_context>
chip_gen: v7x
topology: tpu7x:2x2x1
jax: 0.10.0
libtpu: 0.0.40
codegen_flags: <defaults>
</compile_context>

<pallas_src>
import functools
import math

import jax
import jax.numpy as jnp
from jax.experimental import pallas as pl
from jax.experimental.pallas import tpu as pltpu


def _groupnorm_kernel(x_ref, w_ref, b_ref, o_ref, *, eps, inv_d, inv_dm1,
                      pattern_rows):
    """Normalize one block of row-folded groups.

    x_ref/o_ref: (R, D)  -- R rows, each row is one (sample, group) slice.
    w_ref/b_ref: (P, D)  -- periodic per-row affine params (P % G == 0,
                            P a multiple of the sublane tile); same block is
                            reused by every grid step.
    """
    R, D = x_ref.shape
    P = pattern_rows
    k = R // P

    # f32 accumulation regardless of input dtype (v5e VPU has no bf16).
    x = x_ref[...].astype(jnp.float32).reshape(k, P, D)

    mean = jnp.sum(x, axis=-1, keepdims=True) * inv_d            # (k, P, 1)
    diff = x - mean
    # torch.var default: unbiased (divide by D - 1).
    var = jnp.sum(diff * diff, axis=-1, keepdims=True) * inv_dm1
    inv = jax.lax.rsqrt(var + eps)                                # EUP

    w = w_ref[...].astype(jnp.float32)[None]                      # (1, P, D)
    b = b_ref[...].astype(jnp.float32)[None]
    y = diff * inv * w + b

    o_ref[...] = y.reshape(R, D).astype(o_ref.dtype)


def group_norm(x, weight, bias, *, num_groups, eps=1e-5,
               target_block_bytes=1 << 20):
    """x: (N, C, H); weight/bias: (1, C, 1). Returns (N, C, H)."""
    N, C, H = x.shape
    G = num_groups
    assert C % G == 0, "C must be divisible by num_groups"
    cg = C // G
    D = cg * H
    NG = N * G

    # Row-folded view: one (sample, group) per row. Contiguous -> free reshape,
    # identical memory order to torch's x.view(N, G, -1).
    x_rows = x.reshape(NG, D)

    # Sublane tile: 8 rows for 4-byte dtypes, 16 for bf16/f16, 32 for int8.
    itemsize = jnp.dtype(x.dtype).itemsize
    sub = 8 * max(1, 4 // itemsize)
    # Affine pattern period: multiple of the sublane tile AND of G, so the
    # per-row weight/bias pattern is identical in every block.
    P = math.lcm(sub, G)

    # Rows per block: multiple of P, sized for ~target_block_bytes of input.
    NG_pad_P = ((NG + P - 1) // P) * P
    k = max(1, target_block_bytes // max(1, P * D * itemsize))
    R = min(k * P, NG_pad_P)
    # Give megacore (v7x: 2 TensorCores) at least two grid steps when possible.
    if NG_pad_P >= 2 * P:
        R = min(R, max(P, (NG_pad_P // (2 * P)) * P))

    rows_padded = ((NG + R - 1) // R) * R
    if rows_padded != NG:
        # Padded zero rows normalize to finite values (var=0 -> rsqrt(eps))
        # and are sliced off below; rows are independent, so no contamination.
        x_rows = jnp.pad(x_rows, ((0, rows_padded - NG), (0, 0)))
    grid = (rows_padded // R,)

    # Compact periodic affine block: only (P, D) elements (independent of N),
    # fetched into VMEM once (constant index_map) and reused by every step.
    w_gd = jnp.broadcast_to(weight.reshape(G, cg, 1), (G, cg, H)).reshape(G, D)
    b_gd = jnp.broadcast_to(bias.reshape(G, cg, 1), (G, cg, H)).reshape(G, D)
    w_pat = jnp.tile(w_gd, (P // G, 1))
    b_pat = jnp.tile(b_gd, (P // G, 1))

    inv_d = 1.0 / D
    # Mirrors torch.var's unbiased denominator (NaN when D == 1, like torch).
    inv_dm1 = (1.0 / (D - 1)) if D > 1 else float("nan")

    kernel = functools.partial(
        _groupnorm_kernel, eps=float(eps), inv_d=inv_d, inv_dm1=inv_dm1,
        pattern_rows=P)

    out_rows = pl.pallas_call(
        kernel,
        out_shape=jax.ShapeDtypeStruct((rows_padded, D), x.dtype),
        grid_spec=pltpu.PrefetchScalarGridSpec(
            num_scalar_prefetch=0,
            grid=grid,
            in_specs=[
                pl.BlockSpec((R, D), lambda i: (i, 0)),
                pl.BlockSpec((P, D), lambda i: (0, 0)),
                pl.BlockSpec((P, D), lambda i: (0, 0)),
            ],
            out_specs=pl.BlockSpec((R, D), lambda i: (i, 0)),
        ),
        compiler_params=pltpu.CompilerParams(
            dimension_semantics=("parallel",),
            # Budget: 2x double-buffered (R, D) in/out blocks + tiny (P, D)
            # params + ~3 f32 block-sized intermediates. With ~1 MiB input
            # blocks this is well under 32 MiB -> safe on v7x (64 MiB VMEM)
            # as well as v5e/v6e.
            vmem_limit_bytes=32 * 1024 * 1024,
        ),
    )(x_rows, w_pat, b_pat)

    # TODO(synk): for very large D (one group row approaching VMEM capacity),
    # add a two-pass D-chunked variant (sum/sumsq sweep, then normalize sweep)
    # with x kept in HBM via memory_space=pl.ANY.

    return out_rows[:NG].reshape(N, C, H)


def _reference(x, weight, bias, num_groups, eps):
    # Pure-JAX reference mirroring the PyTorch forward (unbiased variance).
    N, C, H = x.shape
    xg = x.reshape(N, num_groups, -1)
    mean = xg.mean(-1, keepdims=True)
    var = jnp.sum((xg - mean) ** 2, axis=-1, keepdims=True) / (xg.shape[-1] - 1)
    xg = (xg - mean) / jnp.sqrt(var + eps)
    return xg.reshape(N, C, H) * weight + bias


if __name__ == "__main__":
    eps = 1e-5
    key = jax.random.PRNGKey(0)

    cases = [
        # (N, C, H, G, target_block_bytes)
        (4, 8, 64, 4, 1 << 20),   # D=128 lane-dense, 2-step grid (megacore)
        (3, 20, 7, 5, 1 << 20),   # ragged: D=28, N*G=15 -> row-padding path
        (8, 8, 64, 4, 4096),      # tiny block target -> multi-step grid
    ]

    for (N, C, H, G, tbb) in cases:
        key, kx, kw, kb = jax.random.split(key, 4)
        x = jax.random.normal(kx, (N, C, H), dtype=jnp.float32)
        # __init__ uses ones/zeros; perturb so the affine path is exercised.
        weight = jnp.ones((1, C, 1), jnp.float32) + 0.1 * jax.random.normal(
            kw, (1, C, 1))
        bias = jnp.zeros((1, C, 1), jnp.float32) + 0.1 * jax.random.normal(
            kb, (1, C, 1))

        out = group_norm(x, weight, bias, num_groups=G, eps=eps,
                         target_block_bytes=tbb)
        out = jax.block_until_ready(out)

        ref = _reference(x, weight, bias, G, eps)
        assert out.shape == (N, C, H)
        assert jnp.allclose(out, ref, atol=1e-5, rtol=1e-5), \
            f"mismatch vs reference for case {(N, C, H, G)}"

    print("KERNEL_OK")
</pallas_src>

<mosaic_0001>
module attributes {stable_mosaic.version = 11 : i64} {
  func.func @_groupnorm_kernel(%arg0: i32, %arg1: memref<8x128xf32, #tpu.memory_space<vmem>>, %arg2: memref<8x128xf32, #tpu.memory_space<vmem>>, %arg3: memref<8x128xf32, #tpu.memory_space<vmem>>, %arg4: memref<8x128xf32, #tpu.memory_space<vmem>>) attributes {dimension_semantics = [#tpu.dimension_semantics<parallel>], iteration_bounds = array<i64: 2>, scalar_prefetch = 0 : i64, scratch_operands = 0 : i64, tpu.core_type = #tpu.core_type<tc>, window_params = [{transform_indices = @transform_0, window_bounds = array<i64: 8, 128>}, {pipeline_mode = #tpu.pipeline_mode<synchronous>, transform_indices = @transform_1, window_bounds = array<i64: 8, 128>}, {pipeline_mode = #tpu.pipeline_mode<synchronous>, transform_indices = @transform_2, window_bounds = array<i64: 8, 128>}, {transform_indices = @transform_3, window_bounds = array<i64: 8, 128>}]} {
    %c0 = arith.constant 0 : index
    %c0_0 = arith.constant 0 : index
    %0 = vector.load %arg1[%c0, %c0_0] : memref<8x128xf32, #tpu.memory_space<vmem>>, vector<8x128xf32>
    %1 = vector.shape_cast %0 : vector<8x128xf32> to vector<1x8x128xf32>
    %cst = arith.constant dense<0.000000e+00> : vector<1x8xf32>
    %2 = vector.multi_reduction <add>, %1, %cst [2] : vector<1x8x128xf32> to vector<1x8xf32>
    %3 = vector.shape_cast %2 : vector<1x8xf32> to vector<1x8x1xf32>
    %cst_1 = arith.constant 7.812500e-03 : f32
    %4 = vector.broadcast %cst_1 : f32 to vector<1x8x1xf32>
    %5 = arith.mulf %3, %4 : vector<1x8x1xf32>
    %6 = vector.broadcast %5 : vector<1x8x1xf32> to vector<1x8x128xf32>
    %7 = arith.subf %1, %6 : vector<1x8x128xf32>
    %8 = arith.mulf %7, %7 : vector<1x8x128xf32>
    %cst_2 = arith.constant dense<0.000000e+00> : vector<1x8xf32>
    %9 = vector.multi_reduction <add>, %8, %cst_2 [2] : vector<1x8x128xf32> to vector<1x8xf32>
    %10 = vector.shape_cast %9 : vector<1x8xf32> to vector<1x8x1xf32>
    %cst_3 = arith.constant 0.00787401571 : f32
    %11 = vector.broadcast %cst_3 : f32 to vector<1x8x1xf32>
    %12 = arith.mulf %10, %11 : vector<1x8x1xf32>
    %cst_4 = arith.constant 9.99999974E-6 : f32
    %13 = vector.broadcast %cst_4 : f32 to vector<1x8x1xf32>
    %14 = arith.addf %12, %13 : vector<1x8x1xf32>
    %15 = math.rsqrt %14 : vector<1x8x1xf32>
    %c0_5 = arith.constant 0 : index
    %c0_6 = arith.constant 0 : index
    %16 = vector.load %arg2[%c0_5, %c0_6] : memref<8x128xf32, #tpu.memory_space<vmem>>, vector<8x128xf32>
    %17 = vector.shape_cast %16 : vector<8x128xf32> to vector<1x8x128xf32>
    %c0_7 = arith.constant 0 : index
    %c0_8 = arith.constant 0 : index
    %18 = vector.load %arg3[%c0_7, %c0_8] : memref<8x128xf32, #tpu.memory_space<vmem>>, vector<8x128xf32>
    %19 = vector.shape_cast %18 : vector<8x128xf32> to vector<1x8x128xf32>
    %20 = vector.broadcast %15 : vector<1x8x1xf32> to vector<1x8x128xf32>
    %21 = arith.mulf %7, %20 : vector<1x8x128xf32>
    %22 = arith.mulf %21, %17 : vector<1x8x128xf32>
    %23 = arith.addf %22, %19 : vector<1x8x128xf32>
    %24 = vector.shape_cast %23 : vector<1x8x128xf32> to vector<8x128xf32>
    %c0_9 = arith.constant 0 : index
    %c0_10 = arith.constant 0 : index
    %25 = vector.load %arg4[%c0_9, %c0_10] : memref<8x128xf32, #tpu.memory_space<vmem>>, vector<8x128xf32>
    tpu.vector_store %arg4[%c0_9, %c0_10], %24 {strides = array<i32>} : memref<8x128xf32, #tpu.memory_space<vmem>>, vector<8x128xf32>,
    return
  }
  func.func @transform_0(%arg0: i32) -> (i32, i32) {
    %c0_i32 = arith.constant 0 : i32
    %c0_i32_0 = arith.constant 0 : i32
    return %arg0, %c0_i32 : i32, i32
  }
  func.func @transform_1(%arg0: i32) -> (i32, i32) {
    %c0_i32 = arith.constant 0 : i32
    %c0_i32_0 = arith.constant 0 : i32
    %c0_i32_1 = arith.constant 0 : i32
    return %c0_i32, %c0_i32_0 : i32, i32
  }
  func.func @transform_2(%arg0: i32) -> (i32, i32) {
    %c0_i32 = arith.constant 0 : i32
    %c0_i32_0 = arith.constant 0 : i32
    %c0_i32_1 = arith.constant 0 : i32
    return %c0_i32, %c0_i32_0 : i32, i32
  }
  func.func @transform_3(%arg0: i32) -> (i32, i32) {
    %c0_i32 = arith.constant 0 : i32
    %c0_i32_0 = arith.constant 0 : i32
    return %arg0, %c0_i32 : i32, i32
  }
}

</mosaic_0001>

<llo_original>
// kernel: tpu_custom_call.1
$region0: #{tpu_custom_call.1}
  #allocation0 [shape = 'u32[]', space=smem, size = 0x4, offset = 0x4, fixed_abs, tag = 'smem constant byte address 0x4 - core index']
  #allocation1 [shape = 'u32[144,128]{1,0:T(1,128)}', space=vmem, size = 0x12000, scoped, tag = 'internal scratch']
  %s0 = inlined_call_operand.hbm [shape: f32[16,128], index: 0, kind: input, shape index: {}]
  %s1 = inlined_call_operand.hbm [shape: f32[8,128], index: 1, kind: input, shape index: {}]
  %s2 = inlined_call_operand.hbm [shape: f32[8,128], index: 2, kind: input, shape index: {}]
  %s3 = inlined_call_operand.hbm [shape: f32[16,128], index: 3, kind: output, shape index: {}]
  %s4 = sld [smem:[#allocation0]]
  $region57: #{tpu_custom_call.1} parent=0
    _
  %s6 = ssub.s32 1, %s4
  %s7 = scalar_select 0, %s6, %s4
  $region1: #{tpu_custom_call.1} parent=0
    #allocation2 [shape = 'u8[8192]{0}', space=vmem, size = 0x2000, scoped, tag = 'input window, operand 0']
    #allocation3 [shape = 's32[2]{0}', space=sflag, size = 0x8, scoped, tag = 'scoped memory for tpu_custom_call.1']
    #allocation4 [shape = 's32[2]{0}', space=sflag, size = 0x8, scoped, tag = 'scoped memory for tpu_custom_call.1']
    #allocation5 [shape = 'u8[4096]{0}', space=vmem, size = 0x1000, scoped, tag = 'input window, operand 1, single buffered']
    #allocation6 [shape = 's32[1]{0}', space=sflag, size = 0x4, scoped, tag = 'scoped memory for tpu_custom_call.1']
    #allocation7 [shape = 'u8[4096]{0}', space=vmem, size = 0x1000, scoped, tag = 'input window, operand 2, single buffered']
    #allocation8 [shape = 'u8[8192]{0}', space=vmem, size = 0x2000, scoped, tag = 'output window, operand 0']
    %8 = vsyncpa [#allocation3], 0
    %s9 = scalar_lea.sflag [#allocation3], 1
    %10 = vsyncpa %s9, 0
    %11 = vsyncpa [#allocation6], 0
    %12 = vsyncpa [#allocation4], 0
    %s13 = scalar_lea.sflag [#allocation4], 1
    %14 = vsyncpa %s13, 0
    loop: start=0, step=1, limit=4
    $region2: #{tpu_custom_call.1} parent=1 // loop_pre_header
      _
    $region3: #{tpu_custom_call.1} parent=1 // loop_header
      %s16 = sphi 0, %s20
      %p17 = scmp.ge.s32.totalorder %s16, 4
      %s26 = sphi 0, %s28
      %s29 = sphi 0, %s26
      %s30 = sphi 0, %s29
      %s46 = sphi 0, %s30
      %s50 = sphi 0, %s50
      %s52 = sphi 0, %s50
      %s53 = sphi 0, %s52
      %s67 = sphi 0, %s53
      %s71 = sphi 0, %s71
      %s73 = sphi 0, %s71
      %s74 = sphi 0, %s73
      %s88 = sphi 0, %s74
      %s94 = sphi 0, %s96
      %s97 = sphi 0, %s94
      %s98 = sphi 0, %s97
      %s114 = sphi 0, %s98
    $region4: #{tpu_custom_call.1} parent=1 // loop_header_branch
      %19 = sbr.rel (%p17) target = $region8
    $region5: #{tpu_custom_call.1} parent=1 // loop_body
      %s21 = ssub.s32 %s16, 1
      %s22 = ssub.s32 %s16, 2
      %s23 = sadd.s32 %s16, 1
      %s24 = ssub.s32 %s16, %s23
      %p25 = scmp.eq.s32.totalorder %s24, 0
      %s27 = sadd.s32 %s26, 1
      %s28 = scalar_select %p25, %s26, %s27
      %p31 = pneg %p25
      %p32 = scmp.eq.s32.totalorder %s16, 1
      %p33 = por %p31, %p32
      %p34 = scmp.ne.s32.totalorder %s26, %s29
      %p35 = scmp.eq.s32.totalorder %s16, 0
      %p36 = por %p34, %p35
      %p37 = scmp.ne.s32.totalorder %s26, %s29
      %p38 = scmp.eq.s32.totalorder %s21, 1
      %p39 = por %p37, %p38
      %p40 = scmp.ne.s32.totalorder %s29, %s30
      %p41 = scmp.eq.s32.totalorder %s21, 0
      %p42 = por %p40, %p41
      %p43 = scmp.ne.s32.totalorder %s29, %s30
      %p44 = scmp.eq.s32.totalorder %s22, 1
      %p45 = por %p43, %p44
      %p47 = scmp.ne.s32.totalorder %s30, %s46
      %p48 = scmp.eq.s32.totalorder %s22, 0
      %p49 = por %p47, %p48
      %s51 = sadd.s32 %s50, 1
      %p54 = scmp.eq.s32.totalorder %s16, 1
      %p55 = scmp.ne.s32.totalorder %s50, %s52
      %p56 = scmp.eq.s32.totalorder %s16, 0
      %p57 = por %p55, %p56
      %p58 = scmp.ne.s32.totalorder %s50, %s52
      %p59 = scmp.eq.s32.totalorder %s21, 1
      %p60 = por %p58, %p59
      %p61 = scmp.ne.s32.totalorder %s52, %s53
      %p62 = scmp.eq.s32.totalorder %s21, 0
      %p63 = por %p61, %p62
      %p64 = scmp.ne.s32.totalorder %s52, %s53
      %p65 = scmp.eq.s32.totalorder %s22, 1
      %p66 = por %p64, %p65
      %p68 = scmp.ne.s32.totalorder %s53, %s67
      %p69 = scmp.eq.s32.totalorder %s22, 0
      %p70 = por %p68, %p69
      %s72 = sadd.s32 %s71, 1
      %p75 = scmp.eq.s32.totalorder %s16, 1
      %p76 = scmp.ne.s32.totalorder %s71, %s73
      %p77 = scmp.eq.s32.totalorder %s16, 0
      %p78 = por %p76, %p77
      %p79 = scmp.ne.s32.totalorder %s71, %s73
      %p80 = scmp.eq.s32.totalorder %s21, 1
      %p81 = por %p79, %p80
      %p82 = scmp.ne.s32.totalorder %s73, %s74
      %p83 = scmp.eq.s32.totalorder %s21, 0
      %p84 = por %p82, %p83
      %p85 = scmp.ne.s32.totalorder %s73, %s74
      %p86 = scmp.eq.s32.totalorder %s22, 1
      %p87 = por %p85, %p86
      %p89 = scmp.ne.s32.totalorder %s74, %s88
      %p90 = scmp.eq.s32.totalorder %s22, 0
      %p91 = por %p89, %p90
      %s92 = ssub.s32 %s16, %s23
      %p93 = scmp.eq.s32.totalorder %s92, 0
      %s95 = sadd.s32 %s94, 1
      %s96 = scalar_select %p93, %s94, %s95
      %p99 = pneg %p93
      %p100 = scmp.eq.s32.totalorder %s16, 1
      %p101 = por %p99, %p100
      %p102 = scmp.ne.s32.totalorder %s94, %s97
      %p103 = scmp.eq.s32.totalorder %s16, 0
      %p104 = por %p102, %p103
      %p105 = scmp.ne.s32.totalorder %s94, %s97
      %p106 = scmp.eq.s32.totalorder %s21, 1
      %p107 = por %p105, %p106
      %p108 = scmp.ne.s32.totalorder %s97, %s98
      %p109 = scmp.eq.s32.totalorder %s21, 0
      %p110 = por %p108, %p109
      %p111 = scmp.ne.s32.totalorder %s97, %s98
      %p112 = scmp.eq.s32.totalorder %s22, 1
      %p113 = por %p111, %p112
      %p115 = scmp.ne.s32.totalorder %s98, %s114
      %p116 = scmp.eq.s32.totalorder %s22, 0
      %p117 = por %p115, %p116
      %p118 = scmp.le.s32.totalorder 1, %s16
      %p119 = scmp.lt.s32.totalorder %s16, 3
      %p120 = pnand %p118, %p119
      %p121 = pneg %p120
      // Predicated region
      $region9: #{tpu_custom_call.1} parent=5 // pred_check
        _
      $region10: #{tpu_custom_call.1} parent=5 // pred_check_branch
        %123 = sbr.rel (%p120) target = $region12
      $region11: #{tpu_custom_call.1} parent=5 // pred_region
        %s124 = ssub.s32 %s16, 1
        // Predicated region
        $region13: #{tpu_custom_call.1} parent=11 // pred_check
          %p125 = pneg %p63
        $region14: #{tpu_custom_call.1} parent=11 // pred_check_branch
          %127 = sbr.rel (%p125) target = $region16
        $region15: #{tpu_custom_call.1} parent=11 // pred_region
          %s129 = ssub.s32 128, 128
          %130 = vsyncadd [#allocation6], %s129
          %s132 = sshll.u32 [#allocation5], 4
          %s133 = int_to_ptr.vmem [resolvable:$true] %s132
          %135 = dma.hbm_to_vmem [thread:$0]  %s1, 128, %s133, [#allocation6]
        $region16: #{tpu_custom_call.1} parent=11 // pred_fallthru
          _
        // Predicated region
        $region17: #{tpu_custom_call.1} parent=11 // pred_check
          %p136 = pneg %p84
        $region18: #{tpu_custom_call.1} parent=11 // pred_check_branch
          %138 = sbr.rel (%p136) target = $region20
        $region19: #{tpu_custom_call.1} parent=11 // pred_region
          %s140 = ssub.s32 128, 128
          %141 = vsyncadd [#allocation6], %s140
          %s143 = sshll.u32 [#allocation7], 4
          %s144 = int_to_ptr.vmem [resolvable:$true] %s143
          %146 = dma.hbm_to_vmem [thread:$0]  %s2, 128, %s144, [#allocation6]
        $region20: #{tpu_custom_call.1} parent=11 // pred_fallthru
          _
      $region12: #{tpu_custom_call.1} parent=5 // pred_fallthru
        _
      %p147 = scmp.lt.s32.totalorder %s16, 2
      // Predicated region
      $region21: #{tpu_custom_call.1} parent=5 // pred_check
        %p148 = pneg %p147
      $region22: #{tpu_custom_call.1} parent=5 // pred_check_branch
        %150 = sbr.rel (%p148) target = $region24
      $region23: #{tpu_custom_call.1} parent=5 // pred_region
        // Predicated region
        $region25: #{tpu_custom_call.1} parent=23 // pred_check
          %p151 = pneg %p36
        $region26: #{tpu_custom_call.1} parent=23 // pred_check_branch
          %153 = sbr.rel (%p151) target = $region28
        $region27: #{tpu_custom_call.1} parent=23 // pred_region
          %s154 = sand.u32 %s26, 1
          %s155 = scalar_lea.sflag [#allocation3], %s154
          %s156 = sand.u32 %s26, 1
          %s157 = smul.addr %s156, 8
          %s158 = scalar_lea.vmem [#allocation2], %s157
          %s160 = ssub.s32 128, 128
          %161 = vsyncadd %s155, %s160
          %s162 = smul.addr %s16, 128
          %s163 = scalar_lea.hbm %s0, %s162
          %s165 = sshll.u32 %s158, 4
          %s166 = int_to_ptr.vmem [resolvable:$true] %s165
          %168 = dma.hbm_to_vmem [thread:$0]  %s163, 128, %s166, %s155
        $region28: #{tpu_custom_call.1} parent=23 // pred_fallthru
          _
      $region24: #{tpu_custom_call.1} parent=5 // pred_fallthru
        _
      %p169 = scmp.le.s32.totalorder 1, %s16
      %p170 = scmp.lt.s32.totalorder %s16, 3
      %p171 = pnand %p169, %p170
      %p172 = pneg %p171
      // Predicated region
      $region29: #{tpu_custom_call.1} parent=5 // pred_check
        _
      $region30: #{tpu_custom_call.1} parent=5 // pred_check_branch
        %174 = sbr.rel (%p171) target = $region32
      $region31: #{tpu_custom_call.1} parent=5 // pred_region
        %s175 = ssub.s32 %s16, 1
        %s176 = sand.u32 %s29, 1
        %s177 = scalar_lea.sflag [#allocation3], %s176
        %s178 = sand.u32 %s29, 1
        %s179 = smul.addr %s178, 8
        %s180 = scalar_lea.vmem [#allocation2], %s179
        // Predicated region
        $region33: #{tpu_custom_call.1} parent=31 // pred_check
          %p181 = pneg %p42
        $region34: #{tpu_custom_call.1} parent=31 // pred_check_branch
          %183 = sbr.rel (%p181) target = $region36
        $region35: #{tpu_custom_call.1} parent=31 // pred_region
          %184 = dma.done %s177, 128
        $region36: #{tpu_custom_call.1} parent=31 // pred_fallthru
          _
        // Predicated region
        $region37: #{tpu_custom_call.1} parent=31 // pred_check
          %p185 = pneg %p63
        $region38: #{tpu_custom_call.1} parent=31 // pred_check_branch
          %187 = sbr.rel (%p185) target = $region40
        $region39: #{tpu_custom_call.1} parent=31 // pred_region
          %188 = dma.done [#allocation6], 128
        $region40: #{tpu_custom_call.1} parent=31 // pred_fallthru
          _
        // Predicated region
        $region41: #{tpu_custom_call.1} parent=31 // pred_check
          %p189 = pneg %p84
        $region42: #{tpu_custom_call.1} parent=31 // pred_check_branch
          %191 = sbr.rel (%p189) target = $region44
        $region43: #{tpu_custom_call.1} parent=31 // pred_region
          %192 = dma.done [#allocation6], 128
        $region44: #{tpu_custom_call.1} parent=31 // pred_fallthru
          _
        %s193 = sand.u32 %s29, 1
        %s194 = scalar_lea.sflag [#allocation3], %s193
        %s195 = sand.u32 %s29, 1
        %s196 = smul.addr %s195, 8
        %s197 = scalar_lea.vmem [#allocation2], %s196
        %p198 = pneg %p42
        %p199 = pneg %p39
        %p200 = pneg %p63
        %p201 = pneg %p60
        %p202 = pneg %p84
        %p203 = pneg %p81
        %p204 = pneg %p110
        %p205 = pneg %p107
        %s206 = sand.u32 %s97, 1
        %s207 = scalar_lea.sflag [#allocation4], %s206
        %s208 = sand.u32 %s97, 1
        %s209 = smul.addr %s208, 8
        %s210 = scalar_lea.vmem [#allocation8], %s209
        %v211 = vld [vmem:[%s180] sm:$0xff]
        %212 = vadd.xlane.f32.xlu0 %v211
        %v213 = vpop.xlane.xlu0 %212
        %v214 = vmul.f32 %v213, 0.0078125
        %v215 = vsub.f32 %v211, %v214
        %v216 = vmul.f32 %v215, %v215
        %217 = vadd.xlane.f32.xlu0 %v216
        %v218 = vpop.xlane.xlu0 %217
        %v219 = vmul.f32 %v218, 0.007874016
        %v220 = vadd.f32 %v219, 1e-05
        %v221 = vrsqrt.pop %v220
        %v222 = vld [vmem:[#allocation5] sm:$0xff]
        %v223 = vld [vmem:[#allocation7] sm:$0xff]
        %v224 = vmul.f32 %v215, %v221
        %v225 = vmul.f32 %v224, %v222
        %v226 = vadd.f32 %v225, %v223
        %227 = vst [vmem:[%s210] sm:$0xff] %v226
        %s228 = sand.u32 %s97, 1
        %s229 = scalar_lea.sflag [#allocation4], %s228
        %s230 = sand.u32 %s97, 1
        %s231 = smul.addr %s230, 8
        %s232 = scalar_lea.vmem [#allocation8], %s231
        // Predicated region
        $region45: #{tpu_custom_call.1} parent=31 // pred_check
          %p233 = pneg %p107
        $region46: #{tpu_custom_call.1} parent=31 // pred_check_branch
          %235 = sbr.rel (%p233) target = $region48
        $region47: #{tpu_custom_call.1} parent=31 // pred_region
          %s237 = ssub.s32 128, 128
          %238 = vsyncadd %s229, %s237
          %s239 = smul.addr %s21, 128
          %s240 = scalar_lea.hbm %s3, %s239
          %s242 = sshll.u32 %s232, 4
          %s243 = int_to_ptr.vmem [resolvable:$true] %s242
          %245 = dma.vmem_to_hbm [thread:$0]  %s243, 128, %s240, %s229
        $region48: #{tpu_custom_call.1} parent=31 // pred_fallthru
          _
      $region32: #{tpu_custom_call.1} parent=5 // pred_fallthru
        _
      %p246 = scmp.le.s32.totalorder 2, %s16
      // Predicated region
      $region49: #{tpu_custom_call.1} parent=5 // pred_check
        %p247 = pneg %p246
      $region50: #{tpu_custom_call.1} parent=5 // pred_check_branch
        %249 = sbr.rel (%p247) target = $region52
      $region51: #{tpu_custom_call.1} parent=5 // pred_region
        %s250 = ssub.s32 %s16, 2
        // Predicated region
        $region53: #{tpu_custom_call.1} parent=51 // pred_check
          %p251 = pneg %p113
        $region54: #{tpu_custom_call.1} parent=51 // pred_check_branch
          %253 = sbr.rel (%p251) target = $region56
        $region55: #{tpu_custom_call.1} parent=51 // pred_region
          %s254 = sand.u32 %s98, 1
          %s255 = scalar_lea.sflag [#allocation4], %s254
          %s256 = sand.u32 %s98, 1
          %s257 = smul.addr %s256, 8
          %s258 = scalar_lea.vmem [#allocation8], %s257
          %259 = dma.done %s255, 128
        $region56: #{tpu_custom_call.1} parent=51 // pred_fallthru
          _
      $region52: #{tpu_custom_call.1} parent=5 // pred_fallthru
        _
    $region6: #{tpu_custom_call.1} parent=1 // loop_footer
      %s20 = sadd.s32 1, %s16
    $region7: #{tpu_custom_call.1} parent=1 // loop_footer_branch
      %15 = sbr.rel target = $region3
    $region8: #{tpu_custom_call.1} parent=1 // loop_exit
      _
    %260 = vsyncpa [#allocation3], 1
    %s261 = scalar_lea.sflag [#allocation3], 1
    %262 = vsyncpa %s261, 1
    %263 = vsyncpa [#allocation6], 1
    %264 = vsyncpa [#allocation4], 1
    %s265 = scalar_lea.sflag [#allocation4], 1
    %266 = vsyncpa %s265, 1

</llo_original>
